<compile_context>
chip_gen: v6e
topology: v6e:2x2x1
jax: 0.10.0
libtpu: 0.0.40
codegen_flags: <defaults>
</compile_context>

<pallas_src>
import jax
import jax.numpy as jnp
from jax.experimental import pallas as pl
from jax.experimental.pallas import tpu as pltpu


def _dense_relu_kernel(x_ref, w_ref, b_ref, out_ref):
    # [TILE_B, D_in] @ [D_in, D_out] -> [TILE_B, D_out] on the MXU (f32 accumulate).
    acc = jnp.dot(x_ref[...], w_ref[...], preferred_element_type=jnp.float32)
    out_ref[...] = jnp.maximum(acc + b_ref[...], 0.0).astype(out_ref.dtype)


def _round_up(n, m):
    return ((n + m - 1) // m) * m


def expand_output_classification_forward(x, W, b, *, tile_b=128):
    """x: [B, D_in] f32; W: [D_in, D_out] f32 (pre-transposed); b: [1, D_out] f32."""
    B, D_in = x.shape
    D_in_w, D_out = W.shape
    assert D_in == D_in_w and b.shape == (1, D_out)

    # Lane-dense padding: feature dims -> multiples of 128, batch -> multiple of TILE_B.
    d_in_p = _round_up(D_in, 128)
    d_out_p = _round_up(D_out, 128)
    tile_b = max(8, min(tile_b, _round_up(B, 8)))
    b_pad = _round_up(B, tile_b)

    xp = jnp.pad(x, ((0, b_pad - B), (0, d_in_p - D_in)))
    wp = jnp.pad(W, ((0, d_in_p - D_in), (0, d_out_p - D_out)))
    bp = jnp.pad(b, ((0, 0), (0, d_out_p - D_out)))

    grid = (b_pad // tile_b,)
    out = pl.pallas_call(
        _dense_relu_kernel,
        out_shape=jax.ShapeDtypeStruct((b_pad, d_out_p), jnp.float32),
        grid=grid,
        in_specs=[
            # Batch-tiled activations stream through the pipeline.
            pl.BlockSpec((tile_b, d_in_p), lambda i: (i, 0)),
            # Weights + bias: full arrays, same block every grid step (stay in VMEM).
            pl.BlockSpec((d_in_p, d_out_p), lambda i: (0, 0)),
            pl.BlockSpec((1, d_out_p), lambda i: (0, 0)),
        ],
        out_specs=pl.BlockSpec((tile_b, d_out_p), lambda i: (i, 0)),
        compiler_params=pltpu.CompilerParams(
            dimension_semantics=("parallel",)),
    )(xp, wp, bp)

    # Slice padded rows / lanes back to the true output shape.
    return out[:B, :D_out]


def _init_linear(key, in_dim, out_dim):
    # Deterministic init mimicking nn.Linear default (uniform +/- 1/sqrt(in_dim)).
    kw, kb = jax.random.split(key)
    bound = 1.0 / (in_dim ** 0.5)
    # Stored already transposed: [in_dim, out_dim].
    W = jax.random.uniform(kw, (in_dim, out_dim), jnp.float32, -bound, bound)
    b = jax.random.uniform(kb, (1, out_dim), jnp.float32, -bound, bound)
    return W, b


def _reference_forward(x, W, b):
    return jnp.maximum(x @ W + b, 0.0)


if __name__ == "__main__":
    key = jax.random.PRNGKey(0)
    k_x, k_lin = jax.random.split(key)

    # Module defaults: input_shape = output_shape = 512. Batch deliberately not a
    # multiple of the tile to exercise the padding/slicing path (grid = (3,)).
    batch, input_dim, output_dim = 300, 512, 512

    x = jax.random.normal(k_x, (batch, input_dim), jnp.float32)
    W, b = _init_linear(k_lin, input_dim, output_dim)

    out = expand_output_classification_forward(x, W, b, tile_b=128)
    out = jax.block_until_ready(out)

    ref = _reference_forward(x, W, b)
    assert out.shape == (batch, output_dim)
    assert jnp.allclose(out, ref, atol=1e-4, rtol=1e-4)

    print("KERNEL_OK")
</pallas_src>

<mosaic_0001>
module attributes {stable_mosaic.version = 11 : i64} {
  func.func @_dense_relu_kernel(%arg0: i32, %arg1: memref<128x512xf32, #tpu.memory_space<vmem>>, %arg2: memref<512x512xf32, #tpu.memory_space<vmem>>, %arg3: memref<1x512xf32, #tpu.memory_space<vmem>>, %arg4: memref<128x512xf32, #tpu.memory_space<vmem>>) attributes {dimension_semantics = [#tpu.dimension_semantics<parallel>], iteration_bounds = array<i64: 3>, scalar_prefetch = 0 : i64, scratch_operands = 0 : i64, tpu.core_type = #tpu.core_type<tc>, window_params = [{transform_indices = @transform_0, window_bounds = array<i64: 128, 512>}, {pipeline_mode = #tpu.pipeline_mode<synchronous>, transform_indices = @transform_1, window_bounds = array<i64: 512, 512>}, {pipeline_mode = #tpu.pipeline_mode<synchronous>, transform_indices = @transform_2, window_bounds = array<i64: 1, 512>}, {transform_indices = @transform_3, window_bounds = array<i64: 128, 512>}]} {
    %c0 = arith.constant 0 : index
    %c0_0 = arith.constant 0 : index
    %0 = vector.load %arg1[%c0, %c0_0] : memref<128x512xf32, #tpu.memory_space<vmem>>, vector<128x512xf32>
    %c0_1 = arith.constant 0 : index
    %c0_2 = arith.constant 0 : index
    %1 = vector.load %arg2[%c0_1, %c0_2] : memref<512x512xf32, #tpu.memory_space<vmem>>, vector<512x512xf32>
    %cst = arith.constant dense<0.000000e+00> : vector<128x512xf32>
    %2 = tpu.matmul %0, %1, %cst {dimension_numbers = #tpu.dot_dimension_numbers<[1], [0], [0], [1], [0, 0, 1, 1], [], []>} : vector<128x512xf32>, vector<512x512xf32>, vector<128x512xf32> -> vector<128x512xf32>
    %c0_3 = arith.constant 0 : index
    %c0_4 = arith.constant 0 : index
    %3 = vector.load %arg3[%c0_3, %c0_4] : memref<1x512xf32, #tpu.memory_space<vmem>>, vector<1x512xf32>
    %4 = vector.broadcast %3 : vector<1x512xf32> to vector<128x512xf32>
    %5 = arith.addf %2, %4 : vector<128x512xf32>
    %cst_5 = arith.constant 0.000000e+00 : f32
    %6 = vector.broadcast %cst_5 : f32 to vector<128x512xf32>
    %7 = arith.maximumf %5, %6 : vector<128x512xf32>
    %c0_6 = arith.constant 0 : index
    %c0_7 = arith.constant 0 : index
    %8 = vector.load %arg4[%c0_6, %c0_7] : memref<128x512xf32, #tpu.memory_space<vmem>>, vector<128x512xf32>
    tpu.vector_store %arg4[%c0_6, %c0_7], %7 {strides = array<i32>} : memref<128x512xf32, #tpu.memory_space<vmem>>, vector<128x512xf32>,
    return
  }
  func.func @transform_0(%arg0: i32) -> (i32, i32) {
    %c0_i32 = arith.constant 0 : i32
    %c0_i32_0 = arith.constant 0 : i32
    return %arg0, %c0_i32 : i32, i32
  }
  func.func @transform_1(%arg0: i32) -> (i32, i32) {
    %c0_i32 = arith.constant 0 : i32
    %c0_i32_0 = arith.constant 0 : i32
    %c0_i32_1 = arith.constant 0 : i32
    return %c0_i32, %c0_i32_0 : i32, i32
  }
  func.func @transform_2(%arg0: i32) -> (i32, i32) {
    %c0_i32 = arith.constant 0 : i32
    %c0_i32_0 = arith.constant 0 : i32
    %c0_i32_1 = arith.constant 0 : i32
    return %c0_i32, %c0_i32_0 : i32, i32
  }
  func.func @transform_3(%arg0: i32) -> (i32, i32) {
    %c0_i32 = arith.constant 0 : i32
    %c0_i32_0 = arith.constant 0 : i32
    return %arg0, %c0_i32 : i32, i32
  }
}

</mosaic_0001>

<llo_original>
// kernel: tpu_custom_call.1
$region0: #{tpu_custom_call.1}
  #allocation0 [shape = 'u32[]', space=smem, size = 0x4, offset = 0x4, fixed_abs, tag = 'smem constant byte address 0x4 - core index']
  #allocation1 [shape = 'u32[144,128]{1,0:T(1,128)}', space=vmem, size = 0x12000, scoped, tag = 'internal scratch']
  %s0 = inlined_call_operand.hbm [shape: f32[384,512], index: 0, kind: input, shape index: {}]
  %s1 = inlined_call_operand.hbm [shape: f32[512,512], index: 1, kind: input, shape index: {}]
  %s2 = inlined_call_operand.hbm [shape: f32[1,512], index: 2, kind: input, shape index: {}]
  %s3 = inlined_call_operand.hbm [shape: f32[384,512], index: 3, kind: output, shape index: {}]
  %s4 = sld [smem:[#allocation0]]
  $region57: #{tpu_custom_call.1} parent=0
    _
  %s6 = ssub.s32 1, %s4
  %s7 = scalar_select 0, %s6, %s4
  $region1: #{tpu_custom_call.1} parent=0
    #allocation2 [shape = 'u8[524288]{0}', space=vmem, size = 0x80000, scoped, tag = 'input window, operand 0']
    #allocation3 [shape = 's32[2]{0}', space=sflag, size = 0x8, scoped, tag = 'scoped memory for tpu_custom_call.1']
    #allocation4 [shape = 's32[2]{0}', space=sflag, size = 0x8, scoped, tag = 'scoped memory for tpu_custom_call.1']
    #allocation5 [shape = 'u8[1048576]{0}', space=vmem, size = 0x100000, scoped, tag = 'input window, operand 1, single buffered']
    #allocation6 [shape = 's32[1]{0}', space=sflag, size = 0x4, scoped, tag = 'scoped memory for tpu_custom_call.1']
    #allocation7 [shape = 'u8[2048]{0}', space=vmem, size = 0x800, scoped, tag = 'input window, operand 2, single buffered']
    #allocation8 [shape = 'u8[524288]{0}', space=vmem, size = 0x80000, scoped, tag = 'output window, operand 0']
    %8 = vsyncpa [#allocation3], 0
    %s9 = scalar_lea.sflag [#allocation3], 1
    %10 = vsyncpa %s9, 0
    %11 = vsyncpa [#allocation6], 0
    %12 = vsyncpa [#allocation4], 0
    %s13 = scalar_lea.sflag [#allocation4], 1
    %14 = vsyncpa %s13, 0
    loop: start=0, step=1, limit=5
    $region2: #{tpu_custom_call.1} parent=1 // loop_pre_header
      _
    $region3: #{tpu_custom_call.1} parent=1 // loop_header
      %s16 = sphi 0, %s20
      %p17 = scmp.ge.s32.totalorder %s16, 5
      %s26 = sphi 0, %s28
      %s29 = sphi 0, %s26
      %s30 = sphi 0, %s29
      %s46 = sphi 0, %s30
      %s50 = sphi 0, %s50
      %s52 = sphi 0, %s50
      %s53 = sphi 0, %s52
      %s67 = sphi 0, %s53
      %s71 = sphi 0, %s71
      %s73 = sphi 0, %s71
      %s74 = sphi 0, %s73
      %s88 = sphi 0, %s74
      %s94 = sphi 0, %s96
      %s97 = sphi 0, %s94
      %s98 = sphi 0, %s97
      %s114 = sphi 0, %s98
    $region4: #{tpu_custom_call.1} parent=1 // loop_header_branch
      %19 = sbr.rel (%p17) target = $region8
    $region5: #{tpu_custom_call.1} parent=1 // loop_body
      %s21 = ssub.s32 %s16, 1
      %s22 = ssub.s32 %s16, 2
      %s23 = sadd.s32 %s16, 1
      %s24 = ssub.s32 %s16, %s23
      %p25 = scmp.eq.s32.totalorder %s24, 0
      %s27 = sadd.s32 %s26, 1
      %s28 = scalar_select %p25, %s26, %s27
      %p31 = pneg %p25
      %p32 = scmp.eq.s32.totalorder %s16, 2
      %p33 = por %p31, %p32
      %p34 = scmp.ne.s32.totalorder %s26, %s29
      %p35 = scmp.eq.s32.totalorder %s16, 0
      %p36 = por %p34, %p35
      %p37 = scmp.ne.s32.totalorder %s26, %s29
      %p38 = scmp.eq.s32.totalorder %s21, 2
      %p39 = por %p37, %p38
      %p40 = scmp.ne.s32.totalorder %s29, %s30
      %p41 = scmp.eq.s32.totalorder %s21, 0
      %p42 = por %p40, %p41
      %p43 = scmp.ne.s32.totalorder %s29, %s30
      %p44 = scmp.eq.s32.totalorder %s22, 2
      %p45 = por %p43, %p44
      %p47 = scmp.ne.s32.totalorder %s30, %s46
      %p48 = scmp.eq.s32.totalorder %s22, 0
      %p49 = por %p47, %p48
      %s51 = sadd.s32 %s50, 1
      %p54 = scmp.eq.s32.totalorder %s16, 2
      %p55 = scmp.ne.s32.totalorder %s50, %s52
      %p56 = scmp.eq.s32.totalorder %s16, 0
      %p57 = por %p55, %p56
      %p58 = scmp.ne.s32.totalorder %s50, %s52
      %p59 = scmp.eq.s32.totalorder %s21, 2
      %p60 = por %p58, %p59
      %p61 = scmp.ne.s32.totalorder %s52, %s53
      %p62 = scmp.eq.s32.totalorder %s21, 0
      %p63 = por %p61, %p62
      %p64 = scmp.ne.s32.totalorder %s52, %s53
      %p65 = scmp.eq.s32.totalorder %s22, 2
      %p66 = por %p64, %p65
      %p68 = scmp.ne.s32.totalorder %s53, %s67
      %p69 = scmp.eq.s32.totalorder %s22, 0
      %p70 = por %p68, %p69
      %s72 = sadd.s32 %s71, 1
      %p75 = scmp.eq.s32.totalorder %s16, 2
      %p76 = scmp.ne.s32.totalorder %s71, %s73
      %p77 = scmp.eq.s32.totalorder %s16, 0
      %p78 = por %p76, %p77
      %p79 = scmp.ne.s32.totalorder %s71, %s73
      %p80 = scmp.eq.s32.totalorder %s21, 2
      %p81 = por %p79, %p80
      %p82 = scmp.ne.s32.totalorder %s73, %s74
      %p83 = scmp.eq.s32.totalorder %s21, 0
      %p84 = por %p82, %p83
      %p85 = scmp.ne.s32.totalorder %s73, %s74
      %p86 = scmp.eq.s32.totalorder %s22, 2
      %p87 = por %p85, %p86
      %p89 = scmp.ne.s32.totalorder %s74, %s88
      %p90 = scmp.eq.s32.totalorder %s22, 0
      %p91 = por %p89, %p90
      %s92 = ssub.s32 %s16, %s23
      %p93 = scmp.eq.s32.totalorder %s92, 0
      %s95 = sadd.s32 %s94, 1
      %s96 = scalar_select %p93, %s94, %s95
      %p99 = pneg %p93
      %p100 = scmp.eq.s32.totalorder %s16, 2
      %p101 = por %p99, %p100
      %p102 = scmp.ne.s32.totalorder %s94, %s97
      %p103 = scmp.eq.s32.totalorder %s16, 0
      %p104 = por %p102, %p103
      %p105 = scmp.ne.s32.totalorder %s94, %s97
      %p106 = scmp.eq.s32.totalorder %s21, 2
      %p107 = por %p105, %p106
      %p108 = scmp.ne.s32.totalorder %s97, %s98
      %p109 = scmp.eq.s32.totalorder %s21, 0
      %p110 = por %p108, %p109
      %p111 = scmp.ne.s32.totalorder %s97, %s98
      %p112 = scmp.eq.s32.totalorder %s22, 2
      %p113 = por %p111, %p112
      %p115 = scmp.ne.s32.totalorder %s98, %s114
      %p116 = scmp.eq.s32.totalorder %s22, 0
      %p117 = por %p115, %p116
      %p118 = scmp.le.s32.totalorder 1, %s16
      %p119 = scmp.lt.s32.totalorder %s16, 4
      %p120 = pnand %p118, %p119
      %p121 = pneg %p120
      // Predicated region
      $region9: #{tpu_custom_call.1} parent=5 // pred_check
        _
      $region10: #{tpu_custom_call.1} parent=5 // pred_check_branch
        %123 = sbr.rel (%p120) target = $region12
      $region11: #{tpu_custom_call.1} parent=5 // pred_region
        %s124 = ssub.s32 %s16, 1
        // Predicated region
        $region13: #{tpu_custom_call.1} parent=11 // pred_check
          %p125 = pneg %p63
        $region14: #{tpu_custom_call.1} parent=11 // pred_check_branch
          %127 = sbr.rel (%p125) target = $region16
        $region15: #{tpu_custom_call.1} parent=11 // pred_region
          %s129 = ssub.s32 32768, 32768
          %130 = vsyncadd [#allocation6], %s129
          %s131 = sshll.u32 [#allocation5], 4
          %s132 = int_to_ptr.vmem [resolvable:$true] %s131
          %137 = dma.hbm_to_vmem [thread:$0]  %s1, 32768, %s132, [#allocation6], 512, 512, 32
        $region16: #{tpu_custom_call.1} parent=11 // pred_fallthru
          _
        // Predicated region
        $region17: #{tpu_custom_call.1} parent=11 // pred_check
          %p138 = pneg %p84
        $region18: #{tpu_custom_call.1} parent=11 // pred_check_branch
          %140 = sbr.rel (%p138) target = $region20
        $region19: #{tpu_custom_call.1} parent=11 // pred_region
          %s142 = ssub.s32 64, 64
          %143 = vsyncadd [#allocation6], %s142
          %s145 = sshll.u32 [#allocation7], 4
          %s146 = int_to_ptr.vmem [resolvable:$true] %s145
          %148 = dma.hbm_to_vmem [thread:$0]  %s2, 64, %s146, [#allocation6]
        $region20: #{tpu_custom_call.1} parent=11 // pred_fallthru
          _
      $region12: #{tpu_custom_call.1} parent=5 // pred_fallthru
        _
      %p149 = scmp.lt.s32.totalorder %s16, 3
      // Predicated region
      $region21: #{tpu_custom_call.1} parent=5 // pred_check
        %p150 = pneg %p149
      $region22: #{tpu_custom_call.1} parent=5 // pred_check_branch
        %152 = sbr.rel (%p150) target = $region24
      $region23: #{tpu_custom_call.1} parent=5 // pred_region
        // Predicated region
        $region25: #{tpu_custom_call.1} parent=23 // pred_check
          %p153 = pneg %p36
        $region26: #{tpu_custom_call.1} parent=23 // pred_check_branch
          %155 = sbr.rel (%p153) target = $region28
        $region27: #{tpu_custom_call.1} parent=23 // pred_region
          %s156 = sand.u32 %s26, 1
          %s157 = scalar_lea.sflag [#allocation3], %s156
          %s158 = sand.u32 %s26, 1
          %s159 = smul.addr %s158, 512
          %s160 = scalar_lea.vmem [#allocation2], %s159
          %s161 = smul.u32 16, %s16
          %s163 = ssub.s32 8192, 8192
          %164 = vsyncadd %s157, %s163
          %s165 = smul.addr %s161, 4
          %s166 = smul.addr %s165, 128
          %s167 = scalar_lea.hbm %s0, %s166
          %s168 = sshll.u32 %s160, 4
          %s169 = int_to_ptr.vmem [resolvable:$true] %s168
          %174 = dma.hbm_to_vmem [thread:$0]  %s167, 8192, %s169, %s157, 512, 512, 32
        $region28: #{tpu_custom_call.1} parent=23 // pred_fallthru
          _
      $region24: #{tpu_custom_call.1} parent=5 // pred_fallthru
        _
      %p175 = scmp.le.s32.totalorder 1, %s16
      %p176 = scmp.lt.s32.totalorder %s16, 4
      %p177 = pnand %p175, %p176
      %p178 = pneg %p177
      // Predicated region
      $region29: #{tpu_custom_call.1} parent=5 // pred_check
        _
      $region30: #{tpu_custom_call.1} parent=5 // pred_check_branch
        %180 = sbr.rel (%p177) target = $region32
      $region31: #{tpu_custom_call.1} parent=5 // pred_region
        %s181 = ssub.s32 %s16, 1
        %s182 = sand.u32 %s29, 1
        %s183 = scalar_lea.sflag [#allocation3], %s182
        %s184 = sand.u32 %s29, 1
        %s185 = smul.addr %s184, 512
        %s186 = scalar_lea.vmem [#allocation2], %s185
        // Predicated region
        $region33: #{tpu_custom_call.1} parent=31 // pred_check
          %p187 = pneg %p42
        $region34: #{tpu_custom_call.1} parent=31 // pred_check_branch
          %189 = sbr.rel (%p187) target = $region36
        $region35: #{tpu_custom_call.1} parent=31 // pred_region
          %190 = dma.done %s183, 8192
        $region36: #{tpu_custom_call.1} parent=31 // pred_fallthru
          _
        // Predicated region
        $region37: #{tpu_custom_call.1} parent=31 // pred_check
          %p191 = pneg %p63
        $region38: #{tpu_custom_call.1} parent=31 // pred_check_branch
          %193 = sbr.rel (%p191) target = $region40
        $region39: #{tpu_custom_call.1} parent=31 // pred_region
          %194 = dma.done [#allocation6], 32768
        $region40: #{tpu_custom_call.1} parent=31 // pred_fallthru
          _
        // Predicated region
        $region41: #{tpu_custom_call.1} parent=31 // pred_check
          %p195 = pneg %p84
        $region42: #{tpu_custom_call.1} parent=31 // pred_check_branch
          %197 = sbr.rel (%p195) target = $region44
        $region43: #{tpu_custom_call.1} parent=31 // pred_region
          %198 = dma.done [#allocation6], 64
        $region44: #{tpu_custom_call.1} parent=31 // pred_fallthru
          _
        %s199 = sand.u32 %s29, 1
        %s200 = scalar_lea.sflag [#allocation3], %s199
        %s201 = sand.u32 %s29, 1
        %s202 = smul.addr %s201, 512
        %s203 = scalar_lea.vmem [#allocation2], %s202
        %p204 = pneg %p42
        %p205 = pneg %p39
        %p206 = pneg %p63
        %p207 = pneg %p60
        %p208 = pneg %p84
        %p209 = pneg %p81
        %p210 = pneg %p110
        %p211 = pneg %p107
        %s212 = sand.u32 %s97, 1
        %s213 = scalar_lea.sflag [#allocation4], %s212
        %s214 = sand.u32 %s97, 1
        %s215 = smul.addr %s214, 512
        %s216 = scalar_lea.vmem [#allocation8], %s215
        %s217 = smul.u32 16, %s21
        %s218 = smul.u32 16, %s21
        %v219 = vld [vmem:[%s186] sm:$0xff]
        %v220 = vld [vmem:[%s186 + $0x8] sm:$0xff]
        %v221 = vld [vmem:[%s186 + $0x10] sm:$0xff]
        %v222 = vld [vmem:[%s186 + $0x18] sm:$0xff]
        %v223 = vld [vmem:[%s186 + $0x20] sm:$0xff]
        %v224 = vld [vmem:[%s186 + $0x28] sm:$0xff]
        %v225 = vld [vmem:[%s186 + $0x30] sm:$0xff]
        %v226 = vld [vmem:[%s186 + $0x38] sm:$0xff]
        %v227 = vld [vmem:[%s186 + $0x40] sm:$0xff]
        %v228 = vld [vmem:[%s186 + $0x48] sm:$0xff]
        %v229 = vld [vmem:[%s186 + $0x50] sm:$0xff]
        %v230 = vld [vmem:[%s186 + $0x58] sm:$0xff]
        %v231 = vld [vmem:[%s186 + $0x60] sm:$0xff]
        %v232 = vld [vmem:[%s186 + $0x68] sm:$0xff]
        %v233 = vld [vmem:[%s186 + $0x70] sm:$0xff]
        %v234 = vld [vmem:[%s186 + $0x78] sm:$0xff]
        %v235 = vld [vmem:[%s186 + $0x80] sm:$0xff]
        %v236 = vld [vmem:[%s186 + $0x88] sm:$0xff]
        %v237 = vld [vmem:[%s186 + $0x90] sm:$0xff]
        %v238 = vld [vmem:[%s186 + $0x98] sm:$0xff]
        %v239 = vld [vmem:[%s186 + $0xa0] sm:$0xff]
        %v240 = vld [vmem:[%s186 + $0xa8] sm:$0xff]
        %v241 = vld [vmem:[%s186 + $0xb0] sm:$0xff]
        %v242 = vld [vmem:[%s186 + $0xb8] sm:$0xff]
        %v243 = vld [vmem:[%s186 + $0xc0] sm:$0xff]
        %v244 = vld [vmem:[%s186 + $0xc8] sm:$0xff]
        %v245 = vld [vmem:[%s186 + $0xd0] sm:$0xff]
        %v246 = vld [vmem:[%s186 + $0xd8] sm:$0xff]
        %v247 = vld [vmem:[%s186 + $0xe0] sm:$0xff]
        %v248 = vld [vmem:[%s186 + $0xe8] sm:$0xff]
        %v249 = vld [vmem:[%s186 + $0xf0] sm:$0xff]
        %v250 = vld [vmem:[%s186 + $0xf8] sm:$0xff]
        %v251 = vld [vmem:[%s186 + $0x100] sm:$0xff]
        %v252 = vld [vmem:[%s186 + $0x108] sm:$0xff]
        %v253 = vld [vmem:[%s186 + $0x110] sm:$0xff]
        %v254 = vld [vmem:[%s186 + $0x118] sm:$0xff]
        %v255 = vld [vmem:[%s186 + $0x120] sm:$0xff]
        %v256 = vld [vmem:[%s186 + $0x128] sm:$0xff]
        %v257 = vld [vmem:[%s186 + $0x130] sm:$0xff]
        %v258 = vld [vmem:[%s186 + $0x138] sm:$0xff]
        %v259 = vld [vmem:[%s186 + $0x140] sm:$0xff]
        %v260 = vld [vmem:[%s186 + $0x148] sm:$0xff]
        %v261 = vld [vmem:[%s186 + $0x150] sm:$0xff]
        %v262 = vld [vmem:[%s186 + $0x158] sm:$0xff]
        %v263 = vld [vmem:[%s186 + $0x160] sm:$0xff]
        %v264 = vld [vmem:[%s186 + $0x168] sm:$0xff]
        %v265 = vld [vmem:[%s186 + $0x170] sm:$0xff]
        %v266 = vld [vmem:[%s186 + $0x178] sm:$0xff]
        %v267 = vld [vmem:[%s186 + $0x180] sm:$0xff]
        %v268 = vld [vmem:[%s186 + $0x188] sm:$0xff]
        %v269 = vld [vmem:[%s186 + $0x190] sm:$0xff]
        %v270 = vld [vmem:[%s186 + $0x198] sm:$0xff]
        %v271 = vld [vmem:[%s186 + $0x1a0] sm:$0xff]
        %v272 = vld [vmem:[%s186 + $0x1a8] sm:$0xff]
        %v273 = vld [vmem:[%s186 + $0x1b0] sm:$0xff]
        %v274 = vld [vmem:[%s186 + $0x1b8] sm:$0xff]
        %v275 = vld [vmem:[%s186 + $0x1c0] sm:$0xff]
        %v276 = vld [vmem:[%s186 + $0x1c8] sm:$0xff]
        %v277 = vld [vmem:[%s186 + $0x1d0] sm:$0xff]
        %v278 = vld [vmem:[%s186 + $0x1d8] sm:$0xff]
        %v279 = vld [vmem:[%s186 + $0x1e0] sm:$0xff]
        %v280 = vld [vmem:[%s186 + $0x1e8] sm:$0xff]
        %v281 = vld [vmem:[%s186 + $0x1f0] sm:$0xff]
        %v282 = vld [vmem:[%s186 + $0x1f8] sm:$0xff]
        %v283 = vld [vmem:[#allocation5] sm:$0xff]
        %v284 = vld [vmem:[#allocation5 + $0x8] sm:$0xff]
        %v285 = vld [vmem:[#allocation5 + $0x10] sm:$0xff]
        %v286 = vld [vmem:[#allocation5 + $0x18] sm:$0xff]
        %v287 = vld [vmem:[#allocation5 + $0x20] sm:$0xff]
        %v288 = vld [vmem:[#allocation5 + $0x28] sm:$0xff]
        %v289 = vld [vmem:[#allocation5 + $0x30] sm:$0xff]
        %v290 = vld [vmem:[#allocation5 + $0x38] sm:$0xff]
        %v291 = vld [vmem:[#allocation5 + $0x40] sm:$0xff]
        %v292 = vld [vmem:[#allocation5 + $0x48] sm:$0xff]
        %v293 = vld [vmem:[#allocation5 + $0x50] sm:$0xff]
        %v294 = vld [vmem:[#allocation5 + $0x58] sm:$0xff]
        %v295 = vld [vmem:[#allocation5 + $0x60] sm:$0xff]
        %v296 = vld [vmem:[#allocation5 + $0x68] sm:$0xff]
        %v297 = vld [vmem:[#allocation5 + $0x70] sm:$0xff]
        %v298 = vld [vmem:[#allocation5 + $0x78] sm:$0xff]
        %v299 = vld [vmem:[#allocation5 + $0x80] sm:$0xff]
        %v300 = vld [vmem:[#allocation5 + $0x88] sm:$0xff]
        %v301 = vld [vmem:[#allocation5 + $0x90] sm:$0xff]
        %v302 = vld [vmem:[#allocation5 + $0x98] sm:$0xff]
        %v303 = vld [vmem:[#allocation5 + $0xa0] sm:$0xff]
        %v304 = vld [vmem:[#allocation5 + $0xa8] sm:$0xff]
        %v305 = vld [vmem:[#allocation5 + $0xb0] sm:$0xff]
        %v306 = vld [vmem:[#allocation5 + $0xb8] sm:$0xff]
        %v307 = vld [vmem:[#allocation5 + $0xc0] sm:$0xff]
        %v308 = vld [vmem:[#allocation5 + $0xc8] sm:$0xff]
        %v309 = vld [vmem:[#allocation5 + $0xd0] sm:$0xff]
        %v310 = vld [vmem:[#allocation5 + $0xd8] sm:$0xff]
        %v311 = vld [vmem:[#allocation5 + $0xe0] sm:$0xff]
        %v312 = vld [vmem:[#allocation5 + $0xe8] sm:$0xff]
        %v313 = vld [vmem:[#allocation5 + $0xf0] sm:$0xff]
        %v314 = vld [vmem:[#allocation5 + $0xf8] sm:$0xff]
        %v315 = vld [vmem:[#allocation5 + $0x100] sm:$0xff]
        %v316 = vld [vmem:[#allocation5 + $0x108] sm:$0xff]
        %v317 = vld [vmem:[#allocation5 + $0x110] sm:$0xff]
        %v318 = vld [vmem:[#allocation5 + $0x118] sm:$0xff]
        %v319 = vld [vmem:[#allocation5 + $0x120] sm:$0xff]
        %v320 = vld [vmem:[#allocation5 + $0x128] sm:$0xff]
        %v321 = vld [vmem:[#allocation5 + $0x130] sm:$0xff]
        %v322 = vld [vmem:[#allocation5 + $0x138] sm:$0xff]
        %v323 = vld [vmem:[#allocation5 + $0x140] sm:$0xff]
        %v324 = vld [vmem:[#allocation5 + $0x148] sm:$0xff]
        %v325 = vld [vmem:[#allocation5 + $0x150] sm:$0xff]
        %v326 = vld [vmem:[#allocation5 + $0x158] sm:$0xff]
        %v327 = vld [vmem:[#allocation5 + $0x160] sm:$0xff]
        %v328 = vld [vmem:[#allocation5 + $0x168] sm:$0xff]
        %v329 = vld [vmem:[#allocation5 + $0x170] sm:$0xff]
        %v330 = vld [vmem:[#allocation5 + $0x178] sm:$0xff]
        %v331 = vld [vmem:[#allocation5 + $0x180] sm:$0xff]
        %v332 = vld [vmem:[#allocation5 + $0x188] sm:$0xff]
        %v333 = vld [vmem:[#allocation5 + $0x190] sm:$0xff]
        %v334 = vld [vmem:[#allocation5 + $0x198] sm:$0xff]
        %v335 = vld [vmem:[#allocation5 + $0x1a0] sm:$0xff]
        %v336 = vld [vmem:[#allocation5 + $0x1a8] sm:$0xff]
        %v337 = vld [vmem:[#allocation5 + $0x1b0] sm:$0xff]
        %v338 = vld [vmem:[#allocation5 + $0x1b8] sm:$0xff]
        %v339 = vld [vmem:[#allocation5 + $0x1c0] sm:$0xff]
        %v340 = vld [vmem:[#allocation5 + $0x1c8] sm:$0xff]
        %v341 = vld [vmem:[#allocation5 + $0x1d0] sm:$0xff]
        %v342 = vld [vmem:[#allocation5 + $0x1d8] sm:$0xff]
        %v343 = vld [vmem:[#allocation5 + $0x1e0] sm:$0xff]
        %v344 = vld [vmem:[#allocation5 + $0x1e8] sm:$0xff]
        %v345 = vld [vmem:[#allocation5 + $0x1f0] sm:$0xff]
        %v346 = vld [vmem:[#allocation5 + $0x1f8] sm:$0xff]
        %v347 = vld [vmem:[#allocation5 + $0x200] sm:$0xff]
        %v348 = vld [vmem:[#allocation5 + $0x208] sm:$0xff]
        %v349 = vld [vmem:[#allocation5 + $0x210] sm:$0xff]
        %v350 = vld [vmem:[#allocation5 + $0x218] sm:$0xff]
        %v351 = vld [vmem:[#allocation5 + $0x220] sm:$0xff]
        %v352 = vld [vmem:[#allocation5 + $0x228] sm:$0xff]
        %v353 = vld [vmem:[#allocation5 + $0x230] sm:$0xff]
        %v354 = vld [vmem:[#allocation5 + $0x238] sm:$0xff]
        %v355 = vld [vmem:[#allocation5 + $0x240] sm:$0xff]
        %v356 = vld [vmem:[#allocation5 + $0x248] sm:$0xff]
        %v357 = vld [vmem:[#allocation5 + $0x250] sm:$0xff]
        %v358 = vld [vmem:[#allocation5 + $0x258] sm:$0xff]
        %v359 = vld [vmem:[#allocation5 + $0x260] sm:$0xff]
        %v360 = vld [vmem:[#allocation5 + $0x268] sm:$0xff]
        %v361 = vld [vmem:[#allocation5 + $0x270] sm:$0xff]
        %v362 = vld [vmem:[#allocation5 + $0x278] sm:$0xff]
        %v363 = vld [vmem:[#allocation5 + $0x280] sm:$0xff]
        %v364 = vld [vmem:[#allocation5 + $0x288] sm:$0xff]
        %v365 = vld [vmem:[#allocation5 + $0x290] sm:$0xff]
        %v366 = vld [vmem:[#allocation5 + $0x298] sm:$0xff]
        %v367 = vld [vmem:[#allocation5 + $0x2a0] sm:$0xff]
        %v368 = vld [vmem:[#allocation5 + $0x2a8] sm:$0xff]
        %v369 = vld [vmem:[#allocation5 + $0x2b0] sm:$0xff]
        %v370 = vld [vmem:[#allocation5 + $0x2b8] sm:$0xff]
        %v371 = vld [vmem:[#allocation5 + $0x2c0] sm:$0xff]
        %v372 = vld [vmem:[#allocation5 + $0x2c8] sm:$0xff]
        %v373 = vld [vmem:[#allocation5 + $0x2d0] sm:$0xff]
        %v374 = vld [vmem:[#allocation5 + $0x2d8] sm:$0xff]
        %v375 = vld [vmem:[#allocation5 + $0x2e0] sm:$0xff]
        %v376 = vld [vmem:[#allocation5 + $0x2e8] sm:$0xff]
        %v377 = vld [vmem:[#allocation5 + $0x2f0] sm:$0xff]
        %v378 = vld [vmem:[#allocation5 + $0x2f8] sm:$0xff]
        %v379 = vld [vmem:[#allocation5 + $0x300] sm:$0xff]
        %v380 = vld [vmem:[#allocation5 + $0x308] sm:$0xff]
        %v381 = vld [vmem:[#allocation5 + $0x310] sm:$0xff]
        %v382 = vld [vmem:[#allocation5 + $0x318] sm:$0xff]
        %v383 = vld [vmem:[#allocation5 + $0x320] sm:$0xff]
        %v384 = vld [vmem:[#allocation5 + $0x328] sm:$0xff]
        %v385 = vld [vmem:[#allocation5 + $0x330] sm:$0xff]
        %v386 = vld [vmem:[#allocation5 + $0x338] sm:$0xff]
        %v387 = vld [vmem:[#allocation5 + $0x340] sm:$0xff]
        %v388 = vld [vmem:[#allocation5 + $0x348] sm:$0xff]
        %v389 = vld [vmem:[#allocation5 + $0x350] sm:$0xff]
        %v390 = vld [vmem:[#allocation5 + $0x358] sm:$0xff]
        %v391 = vld [vmem:[#allocation5 + $0x360] sm:$0xff]
        %v392 = vld [vmem:[#allocation5 + $0x368] sm:$0xff]
        %v393 = vld [vmem:[#allocation5 + $0x370] sm:$0xff]
        %v394 = vld [vmem:[#allocation5 + $0x378] sm:$0xff]
        %v395 = vld [vmem:[#allocation5 + $0x380] sm:$0xff]
        %v396 = vld [vmem:[#allocation5 + $0x388] sm:$0xff]
        %v397 = vld [vmem:[#allocation5 + $0x390] sm:$0xff]
        %v398 = vld [vmem:[#allocation5 + $0x398] sm:$0xff]
        %v399 = vld [vmem:[#allocation5 + $0x3a0] sm:$0xff]
        %v400 = vld [vmem:[#allocation5 + $0x3a8] sm:$0xff]
        %v401 = vld [vmem:[#allocation5 + $0x3b0] sm:$0xff]
        %v402 = vld [vmem:[#allocation5 + $0x3b8] sm:$0xff]
        %v403 = vld [vmem:[#allocation5 + $0x3c0] sm:$0xff]
        %v404 = vld [vmem:[#allocation5 + $0x3c8] sm:$0xff]
        %v405 = vld [vmem:[#allocation5 + $0x3d0] sm:$0xff]
        %v406 = vld [vmem:[#allocation5 + $0x3d8] sm:$0xff]
        %v407 = vld [vmem:[#allocation5 + $0x3e0] sm:$0xff]
        %v408 = vld [vmem:[#allocation5 + $0x3e8] sm:$0xff]
        %v409 = vld [vmem:[#allocation5 + $0x3f0] sm:$0xff]
        %v410 = vld [vmem:[#allocation5 + $0x3f8] sm:$0xff]
        %v411 = vld [vmem:[#allocation5 + $0x400] sm:$0xff]
        %v412 = vld [vmem:[#allocation5 + $0x408] sm:$0xff]
        %v413 = vld [vmem:[#allocation5 + $0x410] sm:$0xff]
        %v414 = vld [vmem:[#allocation5 + $0x418] sm:$0xff]
        %v415 = vld [vmem:[#allocation5 + $0x420] sm:$0xff]
        %v416 = vld [vmem:[#allocation5 + $0x428] sm:$0xff]
        %v417 = vld [vmem:[#allocation5 + $0x430] sm:$0xff]
        %v418 = vld [vmem:[#allocation5 + $0x438] sm:$0xff]
        %v419 = vld [vmem:[#allocation5 + $0x440] sm:$0xff]
        %v420 = vld [vmem:[#allocation5 + $0x448] sm:$0xff]
        %v421 = vld [vmem:[#allocation5 + $0x450] sm:$0xff]
        %v422 = vld [vmem:[#allocation5 + $0x458] sm:$0xff]
        %v423 = vld [vmem:[#allocation5 + $0x460] sm:$0xff]
        %v424 = vld [vmem:[#allocation5 + $0x468] sm:$0xff]
        %v425 = vld [vmem:[#allocation5 + $0x470] sm:$0xff]
        %v426 = vld [vmem:[#allocation5 + $0x478] sm:$0xff]
        %v427 = vld [vmem:[#allocation5 + $0x480] sm:$0xff]
        %v428 = vld [vmem:[#allocation5 + $0x488] sm:$0xff]
        %v429 = vld [vmem:[#allocation5 + $0x490] sm:$0xff]
        %v430 = vld [vmem:[#allocation5 + $0x498] sm:$0xff]
        %v431 = vld [vmem:[#allocation5 + $0x4a0] sm:$0xff]
        %v432 = vld [vmem:[#allocation5 + $0x4a8] sm:$0xff]
        %v433 = vld [vmem:[#allocation5 + $0x4b0] sm:$0xff]
        %v434 = vld [vmem:[#allocation5 + $0x4b8] sm:$0xff]
        %v435 = vld [vmem:[#allocation5 + $0x4c0] sm:$0xff]
        %v436 = vld [vmem:[#allocation5 + $0x4c8] sm:$0xff]
        %v437 = vld [vmem:[#allocation5 + $0x4d0] sm:$0xff]
        %v438 = vld [vmem:[#allocation5 + $0x4d8] sm:$0xff]
        %v439 = vld [vmem:[#allocation5 + $0x4e0] sm:$0xff]
        %v440 = vld [vmem:[#allocation5 + $0x4e8] sm:$0xff]
        %v441 = vld [vmem:[#allocation5 + $0x4f0] sm:$0xff]
        %v442 = vld [vmem:[#allocation5 + $0x4f8] sm:$0xff]
        %v443 = vld [vmem:[#allocation5 + $0x500] sm:$0xff]
        %v444 = vld [vmem:[#allocation5 + $0x508] sm:$0xff]
        %v445 = vld [vmem:[#allocation5 + $0x510] sm:$0xff]
        %v446 = vld [vmem:[#allocation5 + $0x518] sm:$0xff]
        %v447 = vld [vmem:[#allocation5 + $0x520] sm:$0xff]
        %v448 = vld [vmem:[#allocation5 + $0x528] sm:$0xff]
        %v449 = vld [vmem:[#allocation5 + $0x530] sm:$0xff]
        %v450 = vld [vmem:[#allocation5 + $0x538] sm:$0xff]
        %v451 = vld [vmem:[#allocation5 + $0x540] sm:$0xff]
        %v452 = vld [vmem:[#allocation5 + $0x548] sm:$0xff]
        %v453 = vld [vmem:[#allocation5 + $0x550] sm:$0xff]
        %v454 = vld [vmem:[#allocation5 + $0x558] sm:$0xff]
        %v455 = vld [vmem:[#allocation5 + $0x560] sm:$0xff]
        %v456 = vld [vmem:[#allocation5 + $0x568] sm:$0xff]
        %v457 = vld [vmem:[#allocation5 + $0x570] sm:$0xff]
        %v458 = vld [vmem:[#allocation5 + $0x578] sm:$0xff]
        %v459 = vld [vmem:[#allocation5 + $0x580] sm:$0xff]
        %v460 = vld [vmem:[#allocation5 + $0x588] sm:$0xff]
        %v461 = vld [vmem:[#allocation5 + $0x590] sm:$0xff]
        %v462 = vld [vmem:[#allocation5 + $0x598] sm:$0xff]
        %v463 = vld [vmem:[#allocation5 + $0x5a0] sm:$0xff]
        %v464 = vld [vmem:[#allocation5 + $0x5a8] sm:$0xff]
        %v465 = vld [vmem:[#allocation5 + $0x5b0] sm:$0xff]
        %v466 = vld [vmem:[#allocation5 + $0x5b8] sm:$0xff]
        %v467 = vld [vmem:[#allocation5 + $0x5c0] sm:$0xff]
        %v468 = vld [vmem:[#allocation5 + $0x5c8] sm:$0xff]
        %v469 = vld [vmem:[#allocation5 + $0x5d0] sm:$0xff]
        %v470 = vld [vmem:[#allocation5 + $0x5d8] sm:$0xff]
        %v471 = vld [vmem:[#allocation5 + $0x5e0] sm:$0xff]
        %v472 = vld [vmem:[#allocation5 + $0x5e8] sm:$0xff]
        %v473 = vld [vmem:[#allocation5 + $0x5f0] sm:$0xff]
        %v474 = vld [vmem:[#allocation5 + $0x5f8] sm:$0xff]
        %v475 = vld [vmem:[#allocation5 + $0x600] sm:$0xff]
        %v476 = vld [vmem:[#allocation5 + $0x608] sm:$0xff]
        %v477 = vld [vmem:[#allocation5 + $0x610] sm:$0xff]
        %v478 = vld [vmem:[#allocation5 + $0x618] sm:$0xff]
        %v479 = vld [vmem:[#allocation5 + $0x620] sm:$0xff]
        %v480 = vld [vmem:[#allocation5 + $0x628] sm:$0xff]
        %v481 = vld [vmem:[#allocation5 + $0x630] sm:$0xff]
        %v482 = vld [vmem:[#allocation5 + $0x638] sm:$0xff]
        %v483 = vld [vmem:[#allocation5 + $0x640] sm:$0xff]
        %v484 = vld [vmem:[#allocation5 + $0x648] sm:$0xff]
        %v485 = vld [vmem:[#allocation5 + $0x650] sm:$0xff]
        %v486 = vld [vmem:[#allocation5 + $0x658] sm:$0xff]
        %v487 = vld [vmem:[#allocation5 + $0x660] sm:$0xff]
        %v488 = vld [vmem:[#allocation5 + $0x668] sm:$0xff]
        %v489 = vld [vmem:[#allocation5 + $0x670] sm:$0xff]
        %v490 = vld [vmem:[#allocation5 + $0x678] sm:$0xff]
        %v491 = vld [vmem:[#allocation5 + $0x680] sm:$0xff]
        %v492 = vld [vmem:[#allocation5 + $0x688] sm:$0xff]
        %v493 = vld [vmem:[#allocation5 + $0x690] sm:$0xff]
        %v494 = vld [vmem:[#allocation5 + $0x698] sm:$0xff]
        %v495 = vld [vmem:[#allocation5 + $0x6a0] sm:$0xff]
        %v496 = vld [vmem:[#allocation5 + $0x6a8] sm:$0xff]
        %v497 = vld [vmem:[#allocation5 + $0x6b0] sm:$0xff]
        %v498 = vld [vmem:[#allocation5 + $0x6b8] sm:$0xff]
        %v499 = vld [vmem:[#allocation5 + $0x6c0] sm:$0xff]
        %v500 = vld [vmem:[#allocation5 + $0x6c8] sm:$0xff]
        %v501 = vld [vmem:[#allocation5 + $0x6d0] sm:$0xff]
        %v502 = vld [vmem:[#allocation5 + $0x6d8] sm:$0xff]
        %v503 = vld [vmem:[#allocation5 + $0x6e0] sm:$0xff]
        %v504 = vld [vmem:[#allocation5 + $0x6e8] sm:$0xff]
        %v505 = vld [vmem:[#allocation5 + $0x6f0] sm:$0xff]
        %v506 = vld [vmem:[#allocation5 + $0x6f8] sm:$0xff]
        %v507 = vld [vmem:[#allocation5 + $0x700] sm:$0xff]
        %v508 = vld [vmem:[#allocation5 + $0x708] sm:$0xff]
        %v509 = vld [vmem:[#allocation5 + $0x710] sm:$0xff]
        %v510 = vld [vmem:[#allocation5 + $0x718] sm:$0xff]
        %v511 = vld [vmem:[#allocation5 + $0x720] sm:$0xff]
        %v512 = vld [vmem:[#allocation5 + $0x728] sm:$0xff]
        %v513 = vld [vmem:[#allocation5 + $0x730] sm:$0xff]
        %v514 = vld [vmem:[#allocation5 + $0x738] sm:$0xff]
        %v515 = vld [vmem:[#allocation5 + $0x740] sm:$0xff]
        %v516 = vld [vmem:[#allocation5 + $0x748] sm:$0xff]
        %v517 = vld [vmem:[#allocation5 + $0x750] sm:$0xff]
        %v518 = vld [vmem:[#allocation5 + $0x758] sm:$0xff]
        %v519 = vld [vmem:[#allocation5 + $0x760] sm:$0xff]
        %v520 = vld [vmem:[#allocation5 + $0x768] sm:$0xff]
        %v521 = vld [vmem:[#allocation5 + $0x770] sm:$0xff]
        %v522 = vld [vmem:[#allocation5 + $0x778] sm:$0xff]
        %v523 = vld [vmem:[#allocation5 + $0x780] sm:$0xff]
        %v524 = vld [vmem:[#allocation5 + $0x788] sm:$0xff]
        %v525 = vld [vmem:[#allocation5 + $0x790] sm:$0xff]
        %v526 = vld [vmem:[#allocation5 + $0x798] sm:$0xff]
        %v527 = vld [vmem:[#allocation5 + $0x7a0] sm:$0xff]
        %v528 = vld [vmem:[#allocation5 + $0x7a8] sm:$0xff]
        %v529 = vld [vmem:[#allocation5 + $0x7b0] sm:$0xff]
        %v530 = vld [vmem:[#allocation5 + $0x7b8] sm:$0xff]
        %v531 = vld [vmem:[#allocation5 + $0x7c0] sm:$0xff]
        %v532 = vld [vmem:[#allocation5 + $0x7c8] sm:$0xff]
        %v533 = vld [vmem:[#allocation5 + $0x7d0] sm:$0xff]
        %v534 = vld [vmem:[#allocation5 + $0x7d8] sm:$0xff]
        %v535 = vld [vmem:[#allocation5 + $0x7e0] sm:$0xff]
        %v536 = vld [vmem:[#allocation5 + $0x7e8] sm:$0xff]
        %v537 = vld [vmem:[#allocation5 + $0x7f0] sm:$0xff]
        %v538 = vld [vmem:[#allocation5 + $0x7f8] sm:$0xff]
        %v539 = vld [vmem:[#allocation7] sm:$0xf]
        %v541 = vlaneseq
        %v542 = vshrl.u32 %v541, 7
        %v543 = vsub.s32 0, %v542
        %v544 = vrot.slane %v539, %v543
        %v545 = vlaneseq
        %v546 = vshrl.u32 %v545, 7
        %v547 = vsub.s32 1, %v546
        %v548 = vrot.slane %v539, %v547
        %v549 = vlaneseq
        %v550 = vshrl.u32 %v549, 7
        %v551 = vsub.s32 2, %v550
        %v552 = vrot.slane %v539, %v551
        %v553 = vlaneseq
        %v554 = vshrl.u32 %v553, 7
        %v555 = vsub.s32 3, %v554
        %v556 = vrot.slane %v539, %v555
        %561 = vmatprep.subr.mxu0 %v344
        %562 = vmatpush1.msra.mxu0 %v343
        %563 = vmatprep.subr.mxu0 %v340
        %564 = vmatpush1.msra.mxu0 %v339
        %565 = vmatprep.subr.mxu0 %v336
        %566 = vmatpush1.msra.mxu0 %v335
        %567 = vmatprep.subr.mxu0 %v332
        %568 = vmatpush1.msra.mxu0 %v331
        %569 = vmatprep.subr.mxu0 %v328
        %570 = vmatpush1.msra.mxu0 %v327
        %571 = vmatprep.subr.mxu0 %v324
        %572 = vmatpush1.msra.mxu0 %v323
        %573 = vmatprep.subr.mxu0 %v320
        %574 = vmatpush1.msra.mxu0 %v319
        %575 = vmatprep.subr.mxu0 %v316
        %576 = vmatpush1.msra.mxu0 %v315
        %577 = vmatprep.subr.mxu0 %v312
        %578 = vmatpush1.msra.mxu0 %v311
        %579 = vmatprep.subr.mxu0 %v308
        %580 = vmatpush1.msra.mxu0 %v307
        %581 = vmatprep.subr.mxu0 %v304
        %582 = vmatpush1.msra.mxu0 %v303
        %583 = vmatprep.subr.mxu0 %v300
        %584 = vmatpush1.msra.mxu0 %v299
        %585 = vmatprep.subr.mxu0 %v296
        %586 = vmatpush1.msra.mxu0 %v295
        %587 = vmatprep.subr.mxu0 %v292
        %588 = vmatpush1.msra.mxu0 %v291
        %589 = vmatprep.subr.mxu0 %v288
        %590 = vmatpush1.msra.mxu0 %v287
        %591 = vmatprep.subr.mxu0 %v284
        %592 = vmatpush1.msra.mxu0 %v283
        %593 = vmatprep.subr.mxu0 %v408
        %594 = vmatpush2.msra.mxu0 %v407
        %595 = vmatprep.subr.mxu0 %v404
        %596 = vmatpush2.msra.mxu0 %v403
        %597 = vmatprep.subr.mxu0 %v400
        %598 = vmatpush2.msra.mxu0 %v399
        %599 = vmatprep.subr.mxu0 %v396
        %600 = vmatpush2.msra.mxu0 %v395
        %601 = vmatprep.subr.mxu0 %v392
        %602 = vmatpush2.msra.mxu0 %v391
        %603 = vmatprep.subr.mxu0 %v388
        %604 = vmatpush2.msra.mxu0 %v387
        %605 = vmatprep.subr.mxu0 %v384
        %606 = vmatpush2.msra.mxu0 %v383
        %607 = vmatprep.subr.mxu0 %v380
        %608 = vmatpush2.msra.mxu0 %v379
        %609 = vmatprep.subr.mxu0 %v376
        %610 = vmatpush2.msra.mxu0 %v375
        %611 = vmatprep.subr.mxu0 %v372
        %612 = vmatpush2.msra.mxu0 %v371
        %613 = vmatprep.subr.mxu0 %v368
        %614 = vmatpush2.msra.mxu0 %v367
        %615 = vmatprep.subr.mxu0 %v364
        %616 = vmatpush2.msra.mxu0 %v363
        %617 = vmatprep.subr.mxu0 %v360
        %618 = vmatpush2.msra.mxu0 %v359
        %619 = vmatprep.subr.mxu0 %v356
        %620 = vmatpush2.msra.mxu0 %v355
        %621 = vmatprep.subr.mxu0 %v352
        %622 = vmatpush2.msra.mxu0 %v351
        %623 = vmatprep.subr.mxu0 %v348
        %624 = vmatpush2.msra.mxu0 %v347
        %625 = vmatprep.mubr.f32.mxu0 %v220
        %626 = vmatmul.mubr.f32.gmra.mxu0 %v219
        %v627 = vpop.f32.mrf.mxu0
        %v628 = vadd.f32 %v544, %v627
        %v629 = vpop.f32.mrf.mxu0
        %v630 = vadd.f32 %v548, %v629
        %631 = vmatprep.mubr.f32.mxu0 %v224
        %632 = vmatmul.mubr.f32.gmra.mxu0 %v223
        %v633 = vpop.f32.mrf.mxu0
        %v634 = vadd.f32 %v544, %v633
        %v635 = vpop.f32.mrf.mxu0
        %v636 = vadd.f32 %v548, %v635
        %637 = vmatprep.mubr.f32.mxu0 %v228
        %638 = vmatmul.mubr.f32.gmra.mxu0 %v227
        %v639 = vpop.f32.mrf.mxu0
        %v640 = vadd.f32 %v544, %v639
        %v641 = vpop.f32.mrf.mxu0
        %v642 = vadd.f32 %v548, %v641
        %643 = vmatprep.mubr.f32.mxu0 %v232
        %644 = vmatmul.mubr.f32.gmra.mxu0 %v231
        %v645 = vpop.f32.mrf.mxu0
        %v646 = vadd.f32 %v544, %v645
        %v647 = vpop.f32.mrf.mxu0
        %v648 = vadd.f32 %v548, %v647
        %649 = vmatprep.mubr.f32.mxu0 %v236
        %650 = vmatmul.mubr.f32.gmra.mxu0 %v235
        %v651 = vpop.f32.mrf.mxu0
        %v652 = vadd.f32 %v544, %v651
        %v653 = vpop.f32.mrf.mxu0
        %v654 = vadd.f32 %v548, %v653
        %655 = vmatprep.mubr.f32.mxu0 %v240
        %656 = vmatmul.mubr.f32.gmra.mxu0 %v239
        %v657 = vpop.f32.mrf.mxu0
        %v658 = vadd.f32 %v544, %v657
        %v659 = vpop.f32.mrf.mxu0
        %v660 = vadd.f32 %v548, %v659
        %661 = vmatprep.mubr.f32.mxu0 %v244
        %662 = vmatmul.mubr.f32.gmra.mxu0 %v243
        %v663 = vpop.f32.mrf.mxu0
        %v664 = vadd.f32 %v544, %v663
        %v665 = vpop.f32.mrf.mxu0
        %v666 = vadd.f32 %v548, %v665
        %667 = vmatprep.mubr.f32.mxu0 %v248
        %668 = vmatmul.mubr.f32.gmra.mxu0 %v247
        %v669 = vpop.f32.mrf.mxu0
        %v670 = vadd.f32 %v544, %v669
        %v671 = vpop.f32.mrf.mxu0
        %v672 = vadd.f32 %v548, %v671
        %673 = vmatprep.mubr.f32.mxu0 %v252
        %674 = vmatmul.mubr.f32.gmra.mxu0 %v251
        %v675 = vpop.f32.mrf.mxu0
        %v676 = vadd.f32 %v544, %v675
        %v677 = vpop.f32.mrf.mxu0
        %v678 = vadd.f32 %v548, %v677
        %679 = vmatprep.mubr.f32.mxu0 %v256
        %680 = vmatmul.mubr.f32.gmra.mxu0 %v255
        %v681 = vpop.f32.mrf.mxu0
        %v682 = vadd.f32 %v544, %v681
        %v683 = vpop.f32.mrf.mxu0
        %v684 = vadd.f32 %v548, %v683
        %685 = vmatprep.mubr.f32.mxu0 %v260
        %686 = vmatmul.mubr.f32.gmra.mxu0 %v259
        %v687 = vpop.f32.mrf.mxu0
        %v688 = vadd.f32 %v544, %v687
        %v689 = vpop.f32.mrf.mxu0
        %v690 = vadd.f32 %v548, %v689
        %691 = vmatprep.mubr.f32.mxu0 %v264
        %692 = vmatmul.mubr.f32.gmra.mxu0 %v263
        %v693 = vpop.f32.mrf.mxu0
        %v694 = vadd.f32 %v544, %v693
        %v695 = vpop.f32.mrf.mxu0
        %v696 = vadd.f32 %v548, %v695
        %697 = vmatprep.mubr.f32.mxu0 %v268
        %698 = vmatmul.mubr.f32.gmra.mxu0 %v267
        %v699 = vpop.f32.mrf.mxu0
        %v700 = vadd.f32 %v544, %v699
        %v701 = vpop.f32.mrf.mxu0
        %v702 = vadd.f32 %v548, %v701
        %703 = vmatprep.mubr.f32.mxu0 %v272
        %704 = vmatmul.mubr.f32.gmra.mxu0 %v271
        %v705 = vpop.f32.mrf.mxu0
        %v706 = vadd.f32 %v544, %v705
        %v707 = vpop.f32.mrf.mxu0
        %v708 = vadd.f32 %v548, %v707
        %709 = vmatprep.mubr.f32.mxu0 %v276
        %710 = vmatmul.mubr.f32.gmra.mxu0 %v275
        %v711 = vpop.f32.mrf.mxu0
        %v712 = vadd.f32 %v544, %v711
        %v713 = vpop.f32.mrf.mxu0
        %v714 = vadd.f32 %v548, %v713
        %715 = vmatprep.mubr.f32.mxu0 %v280
        %716 = vmatmul.mubr.f32.gmra.mxu0 %v279
        %v717 = vpop.f32.mrf.mxu0
        %v718 = vadd.f32 %v544, %v717
        %v719 = vpop.f32.mrf.mxu0
        %v720 = vadd.f32 %v548, %v719
        %721 = vdwg.mxu0
        %722 = vmatprep.subr.mxu0 %v472
        %723 = vmatpush1.msra.mxu0 %v471
        %724 = vmatprep.subr.mxu0 %v468
        %725 = vmatpush1.msra.mxu0 %v467
        %726 = vmatprep.subr.mxu0 %v464
        %727 = vmatpush1.msra.mxu0 %v463
        %728 = vmatprep.subr.mxu0 %v460
        %729 = vmatpush1.msra.mxu0 %v459
        %730 = vmatprep.subr.mxu0 %v456
        %731 = vmatpush1.msra.mxu0 %v455
        %732 = vmatprep.subr.mxu0 %v452
        %733 = vmatpush1.msra.mxu0 %v451
        %734 = vmatprep.subr.mxu0 %v448
        %735 = vmatpush1.msra.mxu0 %v447
        %736 = vmatprep.subr.mxu0 %v444
        %737 = vmatpush1.msra.mxu0 %v443
        %738 = vmatprep.subr.mxu0 %v440
        %739 = vmatpush1.msra.mxu0 %v439
        %740 = vmatprep.subr.mxu0 %v436
        %741 = vmatpush1.msra.mxu0 %v435
        %742 = vmatprep.subr.mxu0 %v432
        %743 = vmatpush1.msra.mxu0 %v431
        %744 = vmatprep.subr.mxu0 %v428
        %745 = vmatpush1.msra.mxu0 %v427
        %746 = vmatprep.subr.mxu0 %v424
        %747 = vmatpush1.msra.mxu0 %v423
        %748 = vmatprep.subr.mxu0 %v420
        %749 = vmatpush1.msra.mxu0 %v419
        %750 = vmatprep.subr.mxu0 %v416
        %751 = vmatpush1.msra.mxu0 %v415
        %752 = vmatprep.subr.mxu0 %v412
        %753 = vmatpush1.msra.mxu0 %v411
        %754 = vmatprep.subr.mxu0 %v536
        %755 = vmatpush2.msra.mxu0 %v535
        %756 = vmatprep.subr.mxu0 %v532
        %757 = vmatpush2.msra.mxu0 %v531
        %758 = vmatprep.subr.mxu0 %v528
        %759 = vmatpush2.msra.mxu0 %v527
        %760 = vmatprep.subr.mxu0 %v524
        %761 = vmatpush2.msra.mxu0 %v523
        %762 = vmatprep.subr.mxu0 %v520
        %763 = vmatpush2.msra.mxu0 %v519
        %764 = vmatprep.subr.mxu0 %v516
        %765 = vmatpush2.msra.mxu0 %v515
        %766 = vmatprep.subr.mxu0 %v512
        %767 = vmatpush2.msra.mxu0 %v511
        %768 = vmatprep.subr.mxu0 %v508
        %769 = vmatpush2.msra.mxu0 %v507
        %770 = vmatprep.subr.mxu0 %v504
        %771 = vmatpush2.msra.mxu0 %v503
        %772 = vmatprep.subr.mxu0 %v500
        %773 = vmatpush2.msra.mxu0 %v499
        %774 = vmatprep.subr.mxu0 %v496
        %775 = vmatpush2.msra.mxu0 %v495
        %776 = vmatprep.subr.mxu0 %v492
        %777 = vmatpush2.msra.mxu0 %v491
        %778 = vmatprep.subr.mxu0 %v488
        %779 = vmatpush2.msra.mxu0 %v487
        %780 = vmatprep.subr.mxu0 %v484
        %781 = vmatpush2.msra.mxu0 %v483
        %782 = vmatprep.subr.mxu0 %v480
        %783 = vmatpush2.msra.mxu0 %v479
        %784 = vmatprep.subr.mxu0 %v476
        %785 = vmatpush2.msra.mxu0 %v475
        %786 = vmatprep.mubr.f32.mxu0 %v222
        %787 = vmatmul.mubr.f32.gmra.mxu0 %v221
        %v788 = vpop.f32.mrf.mxu0
        %v789 = vadd.f32 %v628, %v788
        %v790 = vpop.f32.mrf.mxu0
        %v791 = vadd.f32 %v630, %v790
        %792 = vmatprep.mubr.f32.mxu0 %v226
        %793 = vmatmul.mubr.f32.gmra.mxu0 %v225
        %v794 = vpop.f32.mrf.mxu0
        %v795 = vadd.f32 %v634, %v794
        %v796 = vpop.f32.mrf.mxu0
        %v797 = vadd.f32 %v636, %v796
        %798 = vmatprep.mubr.f32.mxu0 %v230
        %799 = vmatmul.mubr.f32.gmra.mxu0 %v229
        %v800 = vpop.f32.mrf.mxu0
        %v801 = vadd.f32 %v640, %v800
        %v802 = vpop.f32.mrf.mxu0
        %v803 = vadd.f32 %v642, %v802
        %804 = vmatprep.mubr.f32.mxu0 %v234
        %805 = vmatmul.mubr.f32.gmra.mxu0 %v233
        %v806 = vpop.f32.mrf.mxu0
        %v807 = vadd.f32 %v646, %v806
        %v808 = vpop.f32.mrf.mxu0
        %v809 = vadd.f32 %v648, %v808
        %810 = vmatprep.mubr.f32.mxu0 %v238
        %811 = vmatmul.mubr.f32.gmra.mxu0 %v237
        %v812 = vpop.f32.mrf.mxu0
        %v813 = vadd.f32 %v652, %v812
        %v814 = vpop.f32.mrf.mxu0
        %v815 = vadd.f32 %v654, %v814
        %816 = vmatprep.mubr.f32.mxu0 %v242
        %817 = vmatmul.mubr.f32.gmra.mxu0 %v241
        %v818 = vpop.f32.mrf.mxu0
        %v819 = vadd.f32 %v658, %v818
        %v820 = vpop.f32.mrf.mxu0
        %v821 = vadd.f32 %v660, %v820
        %822 = vmatprep.mubr.f32.mxu0 %v246
        %823 = vmatmul.mubr.f32.gmra.mxu0 %v245
        %v824 = vpop.f32.mrf.mxu0
        %v825 = vadd.f32 %v664, %v824
        %v826 = vpop.f32.mrf.mxu0
        %v827 = vadd.f32 %v666, %v826
        %828 = vmatprep.mubr.f32.mxu0 %v250
        %829 = vmatmul.mubr.f32.gmra.mxu0 %v249
        %v830 = vpop.f32.mrf.mxu0
        %v831 = vadd.f32 %v670, %v830
        %v832 = vpop.f32.mrf.mxu0
        %v833 = vadd.f32 %v672, %v832
        %834 = vmatprep.mubr.f32.mxu0 %v254
        %835 = vmatmul.mubr.f32.gmra.mxu0 %v253
        %v836 = vpop.f32.mrf.mxu0
        %v837 = vadd.f32 %v676, %v836
        %v838 = vpop.f32.mrf.mxu0
        %v839 = vadd.f32 %v678, %v838
        %840 = vmatprep.mubr.f32.mxu0 %v258
        %841 = vmatmul.mubr.f32.gmra.mxu0 %v257
        %v842 = vpop.f32.mrf.mxu0
        %v843 = vadd.f32 %v682, %v842
        %v844 = vpop.f32.mrf.mxu0
        %v845 = vadd.f32 %v684, %v844
        %846 = vmatprep.mubr.f32.mxu0 %v262
        %847 = vmatmul.mubr.f32.gmra.mxu0 %v261
        %v848 = vpop.f32.mrf.mxu0
        %v849 = vadd.f32 %v688, %v848
        %v850 = vpop.f32.mrf.mxu0
        %v851 = vadd.f32 %v690, %v850
        %852 = vmatprep.mubr.f32.mxu0 %v266
        %853 = vmatmul.mubr.f32.gmra.mxu0 %v265
        %v854 = vpop.f32.mrf.mxu0
        %v855 = vadd.f32 %v694, %v854
        %v856 = vpop.f32.mrf.mxu0
        %v857 = vadd.f32 %v696, %v856
        %858 = vmatprep.mubr.f32.mxu0 %v270
        %859 = vmatmul.mubr.f32.gmra.mxu0 %v269
        %v860 = vpop.f32.mrf.mxu0
        %v861 = vadd.f32 %v700, %v860
        %v862 = vpop.f32.mrf.mxu0
        %v863 = vadd.f32 %v702, %v862
        %864 = vmatprep.mubr.f32.mxu0 %v274
        %865 = vmatmul.mubr.f32.gmra.mxu0 %v273
        %v866 = vpop.f32.mrf.mxu0
        %v867 = vadd.f32 %v706, %v866
        %v868 = vpop.f32.mrf.mxu0
        %v869 = vadd.f32 %v708, %v868
        %870 = vmatprep.mubr.f32.mxu0 %v278
        %871 = vmatmul.mubr.f32.gmra.mxu0 %v277
        %v872 = vpop.f32.mrf.mxu0
        %v873 = vadd.f32 %v712, %v872
        %v874 = vpop.f32.mrf.mxu0
        %v875 = vadd.f32 %v714, %v874
        %876 = vmatprep.mubr.f32.mxu0 %v282
        %877 = vmatmul.mubr.f32.gmra.mxu0 %v281
        %v878 = vpop.f32.mrf.mxu0
        %v879 = vadd.f32 %v718, %v878
        %v880 = vpop.f32.mrf.mxu0
        %v881 = vadd.f32 %v720, %v880
        %882 = vdwg.mxu0
        %883 = vmatprep.subr.mxu0 %v346
        %884 = vmatpush1.msra.mxu0 %v345
        %885 = vmatprep.subr.mxu0 %v342
        %886 = vmatpush1.msra.mxu0 %v341
        %887 = vmatprep.subr.mxu0 %v338
        %888 = vmatpush1.msra.mxu0 %v337
        %889 = vmatprep.subr.mxu0 %v334
        %890 = vmatpush1.msra.mxu0 %v333
        %891 = vmatprep.subr.mxu0 %v330
        %892 = vmatpush1.msra.mxu0 %v329
        %893 = vmatprep.subr.mxu0 %v326
        %894 = vmatpush1.msra.mxu0 %v325
        %895 = vmatprep.subr.mxu0 %v322
        %896 = vmatpush1.msra.mxu0 %v321
        %897 = vmatprep.subr.mxu0 %v318
        %898 = vmatpush1.msra.mxu0 %v317
        %899 = vmatprep.subr.mxu0 %v314
        %900 = vmatpush1.msra.mxu0 %v313
        %901 = vmatprep.subr.mxu0 %v310
        %902 = vmatpush1.msra.mxu0 %v309
        %903 = vmatprep.subr.mxu0 %v306
        %904 = vmatpush1.msra.mxu0 %v305
        %905 = vmatprep.subr.mxu0 %v302
        %906 = vmatpush1.msra.mxu0 %v301
        %907 = vmatprep.subr.mxu0 %v298
        %908 = vmatpush1.msra.mxu0 %v297
        %909 = vmatprep.subr.mxu0 %v294
        %910 = vmatpush1.msra.mxu0 %v293
        %911 = vmatprep.subr.mxu0 %v290
        %912 = vmatpush1.msra.mxu0 %v289
        %913 = vmatprep.subr.mxu0 %v286
        %914 = vmatpush1.msra.mxu0 %v285
        %915 = vmatprep.subr.mxu0 %v410
        %916 = vmatpush2.msra.mxu0 %v409
        %917 = vmatprep.subr.mxu0 %v406
        %918 = vmatpush2.msra.mxu0 %v405
        %919 = vmatprep.subr.mxu0 %v402
        %920 = vmatpush2.msra.mxu0 %v401
        %921 = vmatprep.subr.mxu0 %v398
        %922 = vmatpush2.msra.mxu0 %v397
        %923 = vmatprep.subr.mxu0 %v394
        %924 = vmatpush2.msra.mxu0 %v393
        %925 = vmatprep.subr.mxu0 %v390
        %926 = vmatpush2.msra.mxu0 %v389
        %927 = vmatprep.subr.mxu0 %v386
        %928 = vmatpush2.msra.mxu0 %v385
        %929 = vmatprep.subr.mxu0 %v382
        %930 = vmatpush2.msra.mxu0 %v381
        %931 = vmatprep.subr.mxu0 %v378
        %932 = vmatpush2.msra.mxu0 %v377
        %933 = vmatprep.subr.mxu0 %v374
        %934 = vmatpush2.msra.mxu0 %v373
        %935 = vmatprep.subr.mxu0 %v370
        %936 = vmatpush2.msra.mxu0 %v369
        %937 = vmatprep.subr.mxu0 %v366
        %938 = vmatpush2.msra.mxu0 %v365
        %939 = vmatprep.subr.mxu0 %v362
        %940 = vmatpush2.msra.mxu0 %v361
        %941 = vmatprep.subr.mxu0 %v358
        %942 = vmatpush2.msra.mxu0 %v357
        %943 = vmatprep.subr.mxu0 %v354
        %944 = vmatpush2.msra.mxu0 %v353
        %945 = vmatprep.subr.mxu0 %v350
        %946 = vmatpush2.msra.mxu0 %v349
        %947 = vmatprep.mubr.f32.mxu0 %v220
        %948 = vmatmul.mubr.f32.gmra.mxu0 %v219
        %v949 = vpop.f32.mrf.mxu0
        %v950 = vadd.f32 %v552, %v949
        %v951 = vpop.f32.mrf.mxu0
        %v952 = vadd.f32 %v556, %v951
        %953 = vmatprep.mubr.f32.mxu0 %v224
        %954 = vmatmul.mubr.f32.gmra.mxu0 %v223
        %v955 = vpop.f32.mrf.mxu0
        %v956 = vadd.f32 %v552, %v955
        %v957 = vpop.f32.mrf.mxu0
        %v958 = vadd.f32 %v556, %v957
        %959 = vmatprep.mubr.f32.mxu0 %v228
        %960 = vmatmul.mubr.f32.gmra.mxu0 %v227
        %v961 = vpop.f32.mrf.mxu0
        %v962 = vadd.f32 %v552, %v961
        %v963 = vpop.f32.mrf.mxu0
        %v964 = vadd.f32 %v556, %v963
        %965 = vmatprep.mubr.f32.mxu0 %v232
        %966 = vmatmul.mubr.f32.gmra.mxu0 %v231
        %v967 = vpop.f32.mrf.mxu0
        %v968 = vadd.f32 %v552, %v967
        %v969 = vpop.f32.mrf.mxu0
        %v970 = vadd.f32 %v556, %v969
        %971 = vmatprep.mubr.f32.mxu0 %v236
        %972 = vmatmul.mubr.f32.gmra.mxu0 %v235
        %v973 = vpop.f32.mrf.mxu0
        %v974 = vadd.f32 %v552, %v973
        %v975 = vpop.f32.mrf.mxu0
        %v976 = vadd.f32 %v556, %v975
        %977 = vmatprep.mubr.f32.mxu0 %v240
        %978 = vmatmul.mubr.f32.gmra.mxu0 %v239
        %v979 = vpop.f32.mrf.mxu0
        %v980 = vadd.f32 %v552, %v979
        %v981 = vpop.f32.mrf.mxu0
        %v982 = vadd.f32 %v556, %v981
        %983 = vmatprep.mubr.f32.mxu0 %v244
        %984 = vmatmul.mubr.f32.gmra.mxu0 %v243
        %v985 = vpop.f32.mrf.mxu0
        %v986 = vadd.f32 %v552, %v985
        %v987 = vpop.f32.mrf.mxu0
        %v988 = vadd.f32 %v556, %v987
        %989 = vmatprep.mubr.f32.mxu0 %v248
        %990 = vmatmul.mubr.f32.gmra.mxu0 %v247
        %v991 = vpop.f32.mrf.mxu0
        %v992 = vadd.f32 %v552, %v991
        %v993 = vpop.f32.mrf.mxu0
        %v994 = vadd.f32 %v556, %v993
        %995 = vmatprep.mubr.f32.mxu0 %v252
        %996 = vmatmul.mubr.f32.gmra.mxu0 %v251
        %v997 = vpop.f32.mrf.mxu0
        %v998 = vadd.f32 %v552, %v997
        %v999 = vpop.f32.mrf.mxu0
        %v1000 = vadd.f32 %v556, %v999
        %1001 = vmatprep.mubr.f32.mxu0 %v256
        %1002 = vmatmul.mubr.f32.gmra.mxu0 %v255
        %v1003 = vpop.f32.mrf.mxu0
        %v1004 = vadd.f32 %v552, %v1003
        %v1005 = vpop.f32.mrf.mxu0
        %v1006 = vadd.f32 %v556, %v1005
        %1007 = vmatprep.mubr.f32.mxu0 %v260
        %1008 = vmatmul.mubr.f32.gmra.mxu0 %v259
        %v1009 = vpop.f32.mrf.mxu0
        %v1010 = vadd.f32 %v552, %v1009
        %v1011 = vpop.f32.mrf.mxu0
        %v1012 = vadd.f32 %v556, %v1011
        %1013 = vmatprep.mubr.f32.mxu0 %v264
        %1014 = vmatmul.mubr.f32.gmra.mxu0 %v263
        %v1015 = vpop.f32.mrf.mxu0
        %v1016 = vadd.f32 %v552, %v1015
        %v1017 = vpop.f32.mrf.mxu0
        %v1018 = vadd.f32 %v556, %v1017
        %1019 = vmatprep.mubr.f32.mxu0 %v268
        %1020 = vmatmul.mubr.f32.gmra.mxu0 %v267
        %v1021 = vpop.f32.mrf.mxu0
        %v1022 = vadd.f32 %v552, %v1021
        %v1023 = vpop.f32.mrf.mxu0
        %v1024 = vadd.f32 %v556, %v1023
        %1025 = vmatprep.mubr.f32.mxu0 %v272
        %1026 = vmatmul.mubr.f32.gmra.mxu0 %v271
        %v1027 = vpop.f32.mrf.mxu0
        %v1028 = vadd.f32 %v552, %v1027
        %v1029 = vpop.f32.mrf.mxu0
        %v1030 = vadd.f32 %v556, %v1029
        %1031 = vmatprep.mubr.f32.mxu0 %v276
        %1032 = vmatmul.mubr.f32.gmra.mxu0 %v275
        %v1033 = vpop.f32.mrf.mxu0
        %v1034 = vadd.f32 %v552, %v1033
        %v1035 = vpop.f32.mrf.mxu0
        %v1036 = vadd.f32 %v556, %v1035
        %1037 = vmatprep.mubr.f32.mxu0 %v280
        %1038 = vmatmul.mubr.f32.gmra.mxu0 %v279
        %v1039 = vpop.f32.mrf.mxu0
        %v1040 = vadd.f32 %v552, %v1039
        %v1041 = vpop.f32.mrf.mxu0
        %v1042 = vadd.f32 %v556, %v1041
        %1043 = vdwg.mxu0
        %1044 = vmatprep.subr.mxu0 %v474
        %1045 = vmatpush1.msra.mxu0 %v473
        %1046 = vmatprep.subr.mxu0 %v470
        %1047 = vmatpush1.msra.mxu0 %v469
        %1048 = vmatprep.subr.mxu0 %v466
        %1049 = vmatpush1.msra.mxu0 %v465
        %1050 = vmatprep.subr.mxu0 %v462
        %1051 = vmatpush1.msra.mxu0 %v461
        %1052 = vmatprep.subr.mxu0 %v458
        %1053 = vmatpush1.msra.mxu0 %v457
        %1054 = vmatprep.subr.mxu0 %v454
        %1055 = vmatpush1.msra.mxu0 %v453
        %1056 = vmatprep.subr.mxu0 %v450
        %1057 = vmatpush1.msra.mxu0 %v449
        %1058 = vmatprep.subr.mxu0 %v446
        %1059 = vmatpush1.msra.mxu0 %v445
        %1060 = vmatprep.subr.mxu0 %v442
        %1061 = vmatpush1.msra.mxu0 %v441
        %1062 = vmatprep.subr.mxu0 %v438
        %1063 = vmatpush1.msra.mxu0 %v437
        %1064 = vmatprep.subr.mxu0 %v434
        %1065 = vmatpush1.msra.mxu0 %v433
        %1066 = vmatprep.subr.mxu0 %v430
        %1067 = vmatpush1.msra.mxu0 %v429
        %1068 = vmatprep.subr.mxu0 %v426
        %1069 = vmatpush1.msra.mxu0 %v425
        %1070 = vmatprep.subr.mxu0 %v422
        %1071 = vmatpush1.msra.mxu0 %v421
        %1072 = vmatprep.subr.mxu0 %v418
        %1073 = vmatpush1.msra.mxu0 %v417
        %1074 = vmatprep.subr.mxu0 %v414
        %1075 = vmatpush1.msra.mxu0 %v413
        %1076 = vmatprep.subr.mxu0 %v538
        %1077 = vmatpush2.msra.mxu0 %v537
        %1078 = vmatprep.subr.mxu0 %v534
        %1079 = vmatpush2.msra.mxu0 %v533
        %1080 = vmatprep.subr.mxu0 %v530
        %1081 = vmatpush2.msra.mxu0 %v529
        %1082 = vmatprep.subr.mxu0 %v526
        %1083 = vmatpush2.msra.mxu0 %v525
        %1084 = vmatprep.subr.mxu0 %v522
        %1085 = vmatpush2.msra.mxu0 %v521
        %1086 = vmatprep.subr.mxu0 %v518
        %1087 = vmatpush2.msra.mxu0 %v517
        %1088 = vmatprep.subr.mxu0 %v514
        %1089 = vmatpush2.msra.mxu0 %v513
        %1090 = vmatprep.subr.mxu0 %v510
        %1091 = vmatpush2.msra.mxu0 %v509
        %1092 = vmatprep.subr.mxu0 %v506
        %1093 = vmatpush2.msra.mxu0 %v505
        %1094 = vmatprep.subr.mxu0 %v502
        %1095 = vmatpush2.msra.mxu0 %v501
        %1096 = vmatprep.subr.mxu0 %v498
        %1097 = vmatpush2.msra.mxu0 %v497
        %1098 = vmatprep.subr.mxu0 %v494
        %1099 = vmatpush2.msra.mxu0 %v493
        %1100 = vmatprep.subr.mxu0 %v490
        %1101 = vmatpush2.msra.mxu0 %v489
        %1102 = vmatprep.subr.mxu0 %v486
        %1103 = vmatpush2.msra.mxu0 %v485
        %1104 = vmatprep.subr.mxu0 %v482
        %1105 = vmatpush2.msra.mxu0 %v481
        %1106 = vmatprep.subr.mxu0 %v478
        %1107 = vmatpush2.msra.mxu0 %v477
        %1108 = vmatprep.mubr.f32.mxu0 %v222
        %1109 = vmatmul.mubr.f32.gmra.mxu0 %v221
        %v1110 = vpop.f32.mrf.mxu0
        %v1111 = vadd.f32 %v950, %v1110
        %v1112 = vpop.f32.mrf.mxu0
        %v1113 = vadd.f32 %v952, %v1112
        %1114 = vmatprep.mubr.f32.mxu0 %v226
        %1115 = vmatmul.mubr.f32.gmra.mxu0 %v225
        %v1116 = vpop.f32.mrf.mxu0
        %v1117 = vadd.f32 %v956, %v1116
        %v1118 = vpop.f32.mrf.mxu0
        %v1119 = vadd.f32 %v958, %v1118
        %1120 = vmatprep.mubr.f32.mxu0 %v230
        %1121 = vmatmul.mubr.f32.gmra.mxu0 %v229
        %v1122 = vpop.f32.mrf.mxu0
        %v1123 = vadd.f32 %v962, %v1122
        %v1124 = vpop.f32.mrf.mxu0
        %v1125 = vadd.f32 %v964, %v1124
        %1126 = vmatprep.mubr.f32.mxu0 %v234
        %1127 = vmatmul.mubr.f32.gmra.mxu0 %v233
        %v1128 = vpop.f32.mrf.mxu0
        %v1129 = vadd.f32 %v968, %v1128
        %v1130 = vpop.f32.mrf.mxu0
        %v1131 = vadd.f32 %v970, %v1130
        %1132 = vmatprep.mubr.f32.mxu0 %v238
        %1133 = vmatmul.mubr.f32.gmra.mxu0 %v237
        %v1134 = vpop.f32.mrf.mxu0
        %v1135 = vadd.f32 %v974, %v1134
        %v1136 = vpop.f32.mrf.mxu0
        %v1137 = vadd.f32 %v976, %v1136
        %1138 = vmatprep.mubr.f32.mxu0 %v242
        %1139 = vmatmul.mubr.f32.gmra.mxu0 %v241
        %v1140 = vpop.f32.mrf.mxu0
        %v1141 = vadd.f32 %v980, %v1140
        %v1142 = vpop.f32.mrf.mxu0
        %v1143 = vadd.f32 %v982, %v1142
        %1144 = vmatprep.mubr.f32.mxu0 %v246
        %1145 = vmatmul.mubr.f32.gmra.mxu0 %v245
        %v1146 = vpop.f32.mrf.mxu0
        %v1147 = vadd.f32 %v986, %v1146
        %v1148 = vpop.f32.mrf.mxu0
        %v1149 = vadd.f32 %v988, %v1148
        %1150 = vmatprep.mubr.f32.mxu0 %v250
        %1151 = vmatmul.mubr.f32.gmra.mxu0 %v249
        %v1152 = vpop.f32.mrf.mxu0
        %v1153 = vadd.f32 %v992, %v1152
        %v1154 = vpop.f32.mrf.mxu0
        %v1155 = vadd.f32 %v994, %v1154
        %1156 = vmatprep.mubr.f32.mxu0 %v254
        %1157 = vmatmul.mubr.f32.gmra.mxu0 %v253
        %v1158 = vpop.f32.mrf.mxu0
        %v1159 = vadd.f32 %v998, %v1158
        %v1160 = vpop.f32.mrf.mxu0
        %v1161 = vadd.f32 %v1000, %v1160
        %1162 = vmatprep.mubr.f32.mxu0 %v258
        %1163 = vmatmul.mubr.f32.gmra.mxu0 %v257
        %v1164 = vpop.f32.mrf.mxu0
        %v1165 = vadd.f32 %v1004, %v1164
        %v1166 = vpop.f32.mrf.mxu0
        %v1167 = vadd.f32 %v1006, %v1166
        %1168 = vmatprep.mubr.f32.mxu0 %v262
        %1169 = vmatmul.mubr.f32.gmra.mxu0 %v261
        %v1170 = vpop.f32.mrf.mxu0
        %v1171 = vadd.f32 %v1010, %v1170
        %v1172 = vpop.f32.mrf.mxu0
        %v1173 = vadd.f32 %v1012, %v1172
        %1174 = vmatprep.mubr.f32.mxu0 %v266
        %1175 = vmatmul.mubr.f32.gmra.mxu0 %v265
        %v1176 = vpop.f32.mrf.mxu0
        %v1177 = vadd.f32 %v1016, %v1176
        %v1178 = vpop.f32.mrf.mxu0
        %v1179 = vadd.f32 %v1018, %v1178
        %1180 = vmatprep.mubr.f32.mxu0 %v270
        %1181 = vmatmul.mubr.f32.gmra.mxu0 %v269
        %v1182 = vpop.f32.mrf.mxu0
        %v1183 = vadd.f32 %v1022, %v1182
        %v1184 = vpop.f32.mrf.mxu0
        %v1185 = vadd.f32 %v1024, %v1184
        %1186 = vmatprep.mubr.f32.mxu0 %v274
        %1187 = vmatmul.mubr.f32.gmra.mxu0 %v273
        %v1188 = vpop.f32.mrf.mxu0
        %v1189 = vadd.f32 %v1028, %v1188
        %v1190 = vpop.f32.mrf.mxu0
        %v1191 = vadd.f32 %v1030, %v1190
        %1192 = vmatprep.mubr.f32.mxu0 %v278
        %1193 = vmatmul.mubr.f32.gmra.mxu0 %v277
        %v1194 = vpop.f32.mrf.mxu0
        %v1195 = vadd.f32 %v1034, %v1194
        %v1196 = vpop.f32.mrf.mxu0
        %v1197 = vadd.f32 %v1036, %v1196
        %1198 = vmatprep.mubr.f32.mxu0 %v282
        %1199 = vmatmul.mubr.f32.gmra.mxu0 %v281
        %v1200 = vpop.f32.mrf.mxu0
        %v1201 = vadd.f32 %v1040, %v1200
        %v1202 = vpop.f32.mrf.mxu0
        %v1203 = vadd.f32 %v1042, %v1202
        %1204 = vdwg.mxu0
        %v1205 = vmax.f32 %v789, 0.0
        %v1206 = vmax.f32 %v791, 0.0
        %v1207 = vmax.f32 %v1111, 0.0
        %v1208 = vmax.f32 %v1113, 0.0
        %v1209 = vmax.f32 %v795, 0.0
        %v1210 = vmax.f32 %v797, 0.0
        %v1211 = vmax.f32 %v1117, 0.0
        %v1212 = vmax.f32 %v1119, 0.0
        %v1213 = vmax.f32 %v801, 0.0
        %v1214 = vmax.f32 %v803, 0.0
        %v1215 = vmax.f32 %v1123, 0.0
        %v1216 = vmax.f32 %v1125, 0.0
        %v1217 = vmax.f32 %v807, 0.0
        %v1218 = vmax.f32 %v809, 0.0
        %v1219 = vmax.f32 %v1129, 0.0
        %v1220 = vmax.f32 %v1131, 0.0
        %v1221 = vmax.f32 %v813, 0.0
        %v1222 = vmax.f32 %v815, 0.0
        %v1223 = vmax.f32 %v1135, 0.0
        %v1224 = vmax.f32 %v1137, 0.0
        %v1225 = vmax.f32 %v819, 0.0
        %v1226 = vmax.f32 %v821, 0.0
        %v1227 = vmax.f32 %v1141, 0.0
        %v1228 = vmax.f32 %v1143, 0.0
        %v1229 = vmax.f32 %v825, 0.0
        %v1230 = vmax.f32 %v827, 0.0
        %v1231 = vmax.f32 %v1147, 0.0
        %v1232 = vmax.f32 %v1149, 0.0
        %v1233 = vmax.f32 %v831, 0.0
        %v1234 = vmax.f32 %v833, 0.0
        %v1235 = vmax.f32 %v1153, 0.0
        %v1236 = vmax.f32 %v1155, 0.0
        %v1237 = vmax.f32 %v837, 0.0
        %v1238 = vmax.f32 %v839, 0.0
        %v1239 = vmax.f32 %v1159, 0.0
        %v1240 = vmax.f32 %v1161, 0.0
        %v1241 = vmax.f32 %v843, 0.0
        %v1242 = vmax.f32 %v845, 0.0
        %v1243 = vmax.f32 %v1165, 0.0
        %v1244 = vmax.f32 %v1167, 0.0
        %v1245 = vmax.f32 %v849, 0.0
        %v1246 = vmax.f32 %v851, 0.0
        %v1247 = vmax.f32 %v1171, 0.0
        %v1248 = vmax.f32 %v1173, 0.0
        %v1249 = vmax.f32 %v855, 0.0
        %v1250 = vmax.f32 %v857, 0.0
        %v1251 = vmax.f32 %v1177, 0.0
        %v1252 = vmax.f32 %v1179, 0.0
        %v1253 = vmax.f32 %v861, 0.0
        %v1254 = vmax.f32 %v863, 0.0
        %v1255 = vmax.f32 %v1183, 0.0
        %v1256 = vmax.f32 %v1185, 0.0
        %v1257 = vmax.f32 %v867, 0.0
        %v1258 = vmax.f32 %v869, 0.0
        %v1259 = vmax.f32 %v1189, 0.0
        %v1260 = vmax.f32 %v1191, 0.0
        %v1261 = vmax.f32 %v873, 0.0
        %v1262 = vmax.f32 %v875, 0.0
        %v1263 = vmax.f32 %v1195, 0.0
        %v1264 = vmax.f32 %v1197, 0.0
        %v1265 = vmax.f32 %v879, 0.0
        %v1266 = vmax.f32 %v881, 0.0
        %v1267 = vmax.f32 %v1201, 0.0
        %v1268 = vmax.f32 %v1203, 0.0
        %1269 = vst [vmem:[%s216] sm:$0xff] %v1205
        %1270 = vst [vmem:[%s216 + $0x8] sm:$0xff] %v1206
        %1271 = vst [vmem:[%s216 + $0x10] sm:$0xff] %v1207
        %1272 = vst [vmem:[%s216 + $0x18] sm:$0xff] %v1208
        %1273 = vst [vmem:[%s216 + $0x20] sm:$0xff] %v1209
        %1274 = vst [vmem:[%s216 + $0x28] sm:$0xff] %v1210
        %1275 = vst [vmem:[%s216 + $0x30] sm:$0xff] %v1211
        %1276 = vst [vmem:[%s216 + $0x38] sm:$0xff] %v1212
        %1277 = vst [vmem:[%s216 + $0x40] sm:$0xff] %v1213
        %1278 = vst [vmem:[%s216 + $0x48] sm:$0xff] %v1214
        %1279 = vst [vmem:[%s216 + $0x50] sm:$0xff] %v1215
        %1280 = vst [vmem:[%s216 + $0x58] sm:$0xff] %v1216
        %1281 = vst [vmem:[%s216 + $0x60] sm:$0xff] %v1217
        %1282 = vst [vmem:[%s216 + $0x68] sm:$0xff] %v1218
        %1283 = vst [vmem:[%s216 + $0x70] sm:$0xff] %v1219
        %1284 = vst [vmem:[%s216 + $0x78] sm:$0xff] %v1220
        %1285 = vst [vmem:[%s216 + $0x80] sm:$0xff] %v1221
        %1286 = vst [vmem:[%s216 + $0x88] sm:$0xff] %v1222
        %1287 = vst [vmem:[%s216 + $0x90] sm:$0xff] %v1223
        %1288 = vst [vmem:[%s216 + $0x98] sm:$0xff] %v1224
        %1289 = vst [vmem:[%s216 + $0xa0] sm:$0xff] %v1225
        %1290 = vst [vmem:[%s216 + $0xa8] sm:$0xff] %v1226
        %1291 = vst [vmem:[%s216 + $0xb0] sm:$0xff] %v1227
        %1292 = vst [vmem:[%s216 + $0xb8] sm:$0xff] %v1228
        %1293 = vst [vmem:[%s216 + $0xc0] sm:$0xff] %v1229
        %1294 = vst [vmem:[%s216 + $0xc8] sm:$0xff] %v1230
        %1295 = vst [vmem:[%s216 + $0xd0] sm:$0xff] %v1231
        %1296 = vst [vmem:[%s216 + $0xd8] sm:$0xff] %v1232
        %1297 = vst [vmem:[%s216 + $0xe0] sm:$0xff] %v1233
        %1298 = vst [vmem:[%s216 + $0xe8] sm:$0xff] %v1234
        %1299 = vst [vmem:[%s216 + $0xf0] sm:$0xff] %v1235
        %1300 = vst [vmem:[%s216 + $0xf8] sm:$0xff] %v1236
        %1301 = vst [vmem:[%s216 + $0x100] sm:$0xff] %v1237
        %1302 = vst [vmem:[%s216 + $0x108] sm:$0xff] %v1238
        %1303 = vst [vmem:[%s216 + $0x110] sm:$0xff] %v1239
        %1304 = vst [vmem:[%s216 + $0x118] sm:$0xff] %v1240
        %1305 = vst [vmem:[%s216 + $0x120] sm:$0xff] %v1241
        %1306 = vst [vmem:[%s216 + $0x128] sm:$0xff] %v1242
        %1307 = vst [vmem:[%s216 + $0x130] sm:$0xff] %v1243
        %1308 = vst [vmem:[%s216 + $0x138] sm:$0xff] %v1244
        %1309 = vst [vmem:[%s216 + $0x140] sm:$0xff] %v1245
        %1310 = vst [vmem:[%s216 + $0x148] sm:$0xff] %v1246
        %1311 = vst [vmem:[%s216 + $0x150] sm:$0xff] %v1247
        %1312 = vst [vmem:[%s216 + $0x158] sm:$0xff] %v1248
        %1313 = vst [vmem:[%s216 + $0x160] sm:$0xff] %v1249
        %1314 = vst [vmem:[%s216 + $0x168] sm:$0xff] %v1250
        %1315 = vst [vmem:[%s216 + $0x170] sm:$0xff] %v1251
        %1316 = vst [vmem:[%s216 + $0x178] sm:$0xff] %v1252
        %1317 = vst [vmem:[%s216 + $0x180] sm:$0xff] %v1253
        %1318 = vst [vmem:[%s216 + $0x188] sm:$0xff] %v1254
        %1319 = vst [vmem:[%s216 + $0x190] sm:$0xff] %v1255
        %1320 = vst [vmem:[%s216 + $0x198] sm:$0xff] %v1256
        %1321 = vst [vmem:[%s216 + $0x1a0] sm:$0xff] %v1257
        %1322 = vst [vmem:[%s216 + $0x1a8] sm:$0xff] %v1258
        %1323 = vst [vmem:[%s216 + $0x1b0] sm:$0xff] %v1259
        %1324 = vst [vmem:[%s216 + $0x1b8] sm:$0xff] %v1260
        %1325 = vst [vmem:[%s216 + $0x1c0] sm:$0xff] %v1261
        %1326 = vst [vmem:[%s216 + $0x1c8] sm:$0xff] %v1262
        %1327 = vst [vmem:[%s216 + $0x1d0] sm:$0xff] %v1263
        %1328 = vst [vmem:[%s216 + $0x1d8] sm:$0xff] %v1264
        %1329 = vst [vmem:[%s216 + $0x1e0] sm:$0xff] %v1265
        %1330 = vst [vmem:[%s216 + $0x1e8] sm:$0xff] %v1266
        %1331 = vst [vmem:[%s216 + $0x1f0] sm:$0xff] %v1267
        %1332 = vst [vmem:[%s216 + $0x1f8] sm:$0xff] %v1268
        %s1333 = sand.u32 %s97, 1
        %s1334 = scalar_lea.sflag [#allocation4], %s1333
        %s1335 = sand.u32 %s97, 1
        %s1336 = smul.addr %s1335, 512
        %s1337 = scalar_lea.vmem [#allocation8], %s1336
        // Predicated region
        $region45: #{tpu_custom_call.1} parent=31 // pred_check
          %p1338 = pneg %p107
        $region46: #{tpu_custom_call.1} parent=31 // pred_check_branch
          %1340 = sbr.rel (%p1338) target = $region48
        $region47: #{tpu_custom_call.1} parent=31 // pred_region
          %s1341 = smul.u32 16, %s21
          %s1343 = ssub.s32 8192, 8192
          %1344 = vsyncadd %s1334, %s1343
          %s1345 = smul.addr %s1341, 4
          %s1346 = smul.addr %s1345, 128
          %s1347 = scalar_lea.hbm %s3, %s1346
          %s1348 = sshll.u32 %s1337, 4
          %s1349 = int_to_ptr.vmem [resolvable:$true] %s1348
          %1354 = dma.vmem_to_hbm [thread:$0]  %s1349, 8192, %s1347, %s1334, 512, 512, 32
        $region48: #{tpu_custom_call.1} parent=31 // pred_fallthru
          _
      $region32: #{tpu_custom_call.1} parent=5 // pred_fallthru
        _
      %p1355 = scmp.le.s32.totalorder 2, %s16
      // Predicated region
      $region49: #{tpu_custom_call.1} parent=5 // pred_check
        %p1356 = pneg %p1355
      $region50: #{tpu_custom_call.1} parent=5 // pred_check_branch
        %1358 = sbr.rel (%p1356) target = $region52
      $region51: #{tpu_custom_call.1} parent=5 // pred_region
        %s1359 = ssub.s32 %s16, 2
        // Predicated region
        $region53: #{tpu_custom_call.1} parent=51 // pred_check
          %p1360 = pneg %p113
        $region54: #{tpu_custom_call.1} parent=51 // pred_check_branch
          %1362 = sbr.rel (%p1360) target = $region56
        $region55: #{tpu_custom_call.1} parent=51 // pred_region
          %s1363 = sand.u32 %s98, 1
          %s1364 = scalar_lea.sflag [#allocation4], %s1363
          %s1365 = sand.u32 %s98, 1
          %s1366 = smul.addr %s1365, 512
          %s1367 = scalar_lea.vmem [#allocation8], %s1366
          %1368 = dma.done %s1364, 8192
        $region56: #{tpu_custom_call.1} parent=51 // pred_fallthru
          _
      $region52: #{tpu_custom_call.1} parent=5 // pred_fallthru
        _
    $region6: #{tpu_custom_call.1} parent=1 // loop_footer
      %s20 = sadd.s32 1, %s16
    $region7: #{tpu_custom_call.1} parent=1 // loop_footer_branch
      %15 = sbr.rel target = $region3
    $region8: #{tpu_custom_call.1} parent=1 // loop_exit
      _
    %1369 = vsyncpa [#allocation3], 1
    %s1370 = scalar_lea.sflag [#allocation3], 1
    %1371 = vsyncpa %s1370, 1
    %1372 = vsyncpa [#allocation6], 1
    %1373 = vsyncpa [#allocation4], 1
    %s1374 = scalar_lea.sflag [#allocation4], 1
    %1375 = vsyncpa %s1374, 1

</llo_original>
